<compile_context>
chip_gen: v7x
topology: tpu7x:2x2x1
jax: 0.10.0
libtpu: 0.0.40
codegen_flags: <defaults>
</compile_context>

<pallas_src>
import jax
import jax.numpy as jnp
from jax.experimental import pallas as pl
from jax.experimental.pallas import tpu as pltpu


FEAT = 256 * 4 * 4  # 4096 features per row (row-major flatten of NCHW)
ROW_TILE = 256      # multiple of 8; 4 MiB f32 tiles -> fits v5e/v6e/v7x VMEM


def _unflatten_copy_kernel(x_ref, o_ref):
    # (TR, 4096) VMEM tiles. Pure copy — the reshape itself is metadata-only.
    o_ref[...] = x_ref[...]


def unflatten(inp: jax.Array) -> jax.Array:
    """Pallas equivalent of torch `inp.view(-1, 256, 4, 4)` (row-major)."""
    # Metadata-only flatten to (N, 4096); same divisibility requirement as
    # torch .view.
    flat = inp.reshape(-1, FEAT)
    n = flat.shape[0]

    # Row tile: 256 (multiple of 8), clamped to n for tiny batches (a block
    # dim equal to the full array dim is always legal).
    tr = min(ROW_TILE, n)

    out_flat = pl.pallas_call(
        _unflatten_copy_kernel,
        out_shape=jax.ShapeDtypeStruct((n, FEAT), flat.dtype),
        grid=(pl.cdiv(n, tr),),
        in_specs=[pl.BlockSpec((tr, FEAT), lambda i: (i, 0))],
        out_specs=pl.BlockSpec((tr, FEAT), lambda i: (i, 0)),
        input_output_aliases={0: 0},
        compiler_params=pltpu.CompilerParams(
            dimension_semantics=("parallel",),
        ),
    )(flat)

    # Final metadata-only reshape to NCHW = (-1, 256, 4, 4).
    return out_flat.reshape(-1, 256, 4, 4)


if __name__ == "__main__":
    key = jax.random.PRNGKey(0)
    # Small batch; feature dim is forced to 256*4*4 = 4096 by the module.
    x = jax.random.normal(key, (2, FEAT), dtype=jnp.float32)

    out = jax.block_until_ready(unflatten(x))

    # Reference: plain JAX reshape (row-major, identical to torch .view —
    # and also the zero-cost implementation the perf review recommends).
    ref = x.reshape(-1, 256, 4, 4)

    assert out.shape == (2, 256, 4, 4), out.shape
    assert out.dtype == x.dtype
    assert jnp.array_equal(out, ref), "mismatch vs. reference reshape"

    print("KERNEL_OK")
</pallas_src>

<mosaic_0001>
module attributes {stable_mosaic.version = 11 : i64} {
  func.func @_unflatten_copy_kernel(%arg0: i32, %arg1: memref<2x4096xf32, #tpu.memory_space<vmem>>, %arg2: memref<2x4096xf32, #tpu.memory_space<vmem>>) attributes {dimension_semantics = [#tpu.dimension_semantics<parallel>], iteration_bounds = array<i64: 1>, scalar_prefetch = 0 : i64, scratch_operands = 0 : i64, tpu.core_type = #tpu.core_type<tc>, window_params = [{transform_indices = @transform_0, window_bounds = array<i64: 2, 4096>}, {transform_indices = @transform_1, window_bounds = array<i64: 2, 4096>}]} {
    %c0 = arith.constant 0 : index
    %c0_0 = arith.constant 0 : index
    %0 = vector.load %arg1[%c0, %c0_0] : memref<2x4096xf32, #tpu.memory_space<vmem>>, vector<2x4096xf32>
    %c0_1 = arith.constant 0 : index
    %c0_2 = arith.constant 0 : index
    %1 = vector.load %arg2[%c0_1, %c0_2] : memref<2x4096xf32, #tpu.memory_space<vmem>>, vector<2x4096xf32>
    tpu.vector_store %arg2[%c0_1, %c0_2], %0 {strides = array<i32>} : memref<2x4096xf32, #tpu.memory_space<vmem>>, vector<2x4096xf32>,
    return
  }
  func.func @transform_0(%arg0: i32) -> (i32, i32) {
    %c0_i32 = arith.constant 0 : i32
    %c0_i32_0 = arith.constant 0 : i32
    return %arg0, %c0_i32 : i32, i32
  }
  func.func @transform_1(%arg0: i32) -> (i32, i32) {
    %c0_i32 = arith.constant 0 : i32
    %c0_i32_0 = arith.constant 0 : i32
    return %arg0, %c0_i32 : i32, i32
  }
}

</mosaic_0001>

<llo_original>
// kernel: tpu_custom_call.1
$region0: #{tpu_custom_call.1}
  #allocation0 [shape = 'u32[]', space=smem, size = 0x4, offset = 0x4, fixed_abs, tag = 'smem constant byte address 0x4 - core index']
  #allocation1 [shape = 'u32[144,128]{1,0:T(1,128)}', space=vmem, size = 0x12000, scoped, tag = 'internal scratch']
  %s0 = inlined_call_operand.hbm [shape: f32[2,4096], index: 0, kind: input, shape index: {}, may-alias: {0,1}]
  %s1 = inlined_call_operand.hbm [shape: f32[2,4096], index: 1, kind: output, shape index: {}, may-alias: {0,1}]
  %s2 = sld [smem:[#allocation0]]
  $region18: #{tpu_custom_call.1} parent=0
    _
  %s4 = ssub.s32 1, %s2
  %s5 = scalar_select 0, %s4, %s2
  $region1: #{tpu_custom_call.1} parent=0
    #allocation2 [shape = 'u8[32768]{0}', space=vmem, size = 0x8000, scoped, tag = 'input window, operand 0, single buffered']
    #allocation3 [shape = 's32[1]{0}', space=sflag, size = 0x4, scoped, tag = 'scoped memory for tpu_custom_call.1']
    #allocation4 [shape = 's32[1]{0}', space=sflag, size = 0x4, scoped, tag = 'scoped memory for tpu_custom_call.1']
    #allocation5 [shape = 'u8[32768]{0}', space=vmem, size = 0x8000, scoped, tag = 'output window, operand 0, single buffered']
    %6 = vsyncpa [#allocation3], 0
    %7 = vsyncpa [#allocation4], 0
    // Predicated region
    $region2: #{tpu_custom_call.1} parent=1 // pred_check
      _
    $region3: #{tpu_custom_call.1} parent=1 // pred_check_branch
      %9 = sbr.rel (0) target = $region5
    $region4: #{tpu_custom_call.1} parent=1 // pred_region
      %s11 = ssub.s32 1024, 1024
      %12 = vsyncadd [#allocation3], %s11
      %s14 = sshll.u32 [#allocation2], 4
      %s15 = int_to_ptr.vmem [resolvable:$true] %s14
      %17 = dma.hbm_to_vmem [thread:$0]  %s0, 1024, %s15, [#allocation3]
    $region5: #{tpu_custom_call.1} parent=1 // pred_fallthru
      _
    // Predicated region
    $region6: #{tpu_custom_call.1} parent=1 // pred_check
      _
    $region7: #{tpu_custom_call.1} parent=1 // pred_check_branch
      %19 = sbr.rel (0) target = $region9
    $region8: #{tpu_custom_call.1} parent=1 // pred_region
      %20 = dma.done [#allocation3], 1024
    $region9: #{tpu_custom_call.1} parent=1 // pred_fallthru
      _
    %v21 = vld [vmem:[#allocation2] sm:$0xff]
    %v22 = vld [vmem:[#allocation2 + $0x8] sm:$0xff]
    %v23 = vld [vmem:[#allocation2 + $0x10] sm:$0xff]
    %v24 = vld [vmem:[#allocation2 + $0x18] sm:$0xff]
    %v25 = vld [vmem:[#allocation2 + $0x20] sm:$0xff]
    %v26 = vld [vmem:[#allocation2 + $0x28] sm:$0xff]
    %v27 = vld [vmem:[#allocation2 + $0x30] sm:$0xff]
    %v28 = vld [vmem:[#allocation2 + $0x38] sm:$0xff]
    %29 = vst [vmem:[#allocation5] sm:$0xff] %v21
    %30 = vst [vmem:[#allocation5 + $0x8] sm:$0xff] %v22
    %31 = vst [vmem:[#allocation5 + $0x10] sm:$0xff] %v23
    %32 = vst [vmem:[#allocation5 + $0x18] sm:$0xff] %v24
    %33 = vst [vmem:[#allocation5 + $0x20] sm:$0xff] %v25
    %34 = vst [vmem:[#allocation5 + $0x28] sm:$0xff] %v26
    %35 = vst [vmem:[#allocation5 + $0x30] sm:$0xff] %v27
    %36 = vst [vmem:[#allocation5 + $0x38] sm:$0xff] %v28
    // Predicated region
    $region10: #{tpu_custom_call.1} parent=1 // pred_check
      _
    $region11: #{tpu_custom_call.1} parent=1 // pred_check_branch
      %38 = sbr.rel (0) target = $region13
    $region12: #{tpu_custom_call.1} parent=1 // pred_region
      %s40 = ssub.s32 1024, 1024
      %41 = vsyncadd [#allocation4], %s40
      %s43 = sshll.u32 [#allocation5], 4
      %s44 = int_to_ptr.vmem [resolvable:$true] %s43
      %46 = dma.vmem_to_hbm [thread:$0]  %s44, 1024, %s1, [#allocation4]
    $region13: #{tpu_custom_call.1} parent=1 // pred_fallthru
      _
    // Predicated region
    $region14: #{tpu_custom_call.1} parent=1 // pred_check
      _
    $region15: #{tpu_custom_call.1} parent=1 // pred_check_branch
      %48 = sbr.rel (0) target = $region17
    $region16: #{tpu_custom_call.1} parent=1 // pred_region
      %49 = dma.done [#allocation4], 1024
    $region17: #{tpu_custom_call.1} parent=1 // pred_fallthru
      _
    %50 = vsyncpa [#allocation3], 1
    %51 = vsyncpa [#allocation4], 1

</llo_original>
